<compile_context>
chip_gen: v6e
topology: v6e:2x2x1
jax: 0.10.0
libtpu: 0.0.40
codegen_flags: <defaults>
</compile_context>

<pallas_src>
import functools

import jax
import jax.numpy as jnp
from jax.experimental import pallas as pl
from jax.experimental.pallas import tpu as pltpu


def _layernorm_kernel(x_ref, w_ref, b_ref, o_ref, *, eps):
    # x_ref: (tr, H) tile of rows; w_ref/b_ref: (1, H); o_ref: (tr, H)
    x = x_ref[...].astype(jnp.float32)
    mean = jnp.mean(x, axis=-1, keepdims=True)
    xc = x - mean
    var = jnp.mean(xc * xc, axis=-1, keepdims=True)   # biased variance (LayerNorm)
    inv = jax.lax.rsqrt(var + eps)
    y = xc * inv
    y = y * w_ref[...].astype(jnp.float32) + b_ref[...].astype(jnp.float32)
    o_ref[...] = y.astype(o_ref.dtype)


def _sublane_multiple(dtype):
    itemsize = jnp.dtype(dtype).itemsize
    if itemsize >= 4:
        return 8
    if itemsize == 2:
        return 16
    return 32


def _round_up(v, m):
    return ((v + m - 1) // m) * m


def mixed_fused_layer_norm(x, weight, bias, eps=1e-5):
    """LayerNorm over the last dim of x. weight/bias shape (H,)."""
    orig_shape = x.shape
    H = orig_shape[-1]
    assert weight.shape == (H,) and bias.shape == (H,)
    x2 = x.reshape(-1, H)
    R = x2.shape[0]

    in_bytes = jnp.dtype(x.dtype).itemsize
    sub = _sublane_multiple(x.dtype)

    # Row-tile selection:
    #  * ~2 MiB input blocks to amortize the ~0.35 us per-grid-step overhead,
    #  * cap total pipelined VMEM (2 buffers x (in + out block)) at ~12 MiB,
    #    which fits the default scoped-VMEM limits on v5e/v6e/v7x,
    #  * keep >= ~8 grid steps (when R allows) so v7x megacore gets both TCs.
    target_block_bytes = 2 << 20
    tr = max(sub, target_block_bytes // max(1, H * in_bytes))
    vmem_budget = 12 << 20
    max_tr_vmem = max(sub, vmem_budget // max(1, 4 * H * in_bytes))
    tr = min(tr, max_tr_vmem)
    target_steps = 8
    tr = min(tr, max(sub, pl.cdiv(R, target_steps)))
    tr = _round_up(tr, sub)

    grid = (pl.cdiv(R, tr),)

    w2 = weight.reshape(1, H)
    b2 = bias.reshape(1, H)

    cost = pl.CostEstimate(
        flops=8 * R * H,
        transcendentals=R,
        bytes_accessed=2 * R * H * in_bytes
        + 2 * H * jnp.dtype(weight.dtype).itemsize,
    )

    out = pl.pallas_call(
        functools.partial(_layernorm_kernel, eps=eps),
        out_shape=jax.ShapeDtypeStruct((R, H), x.dtype),
        grid_spec=pltpu.PrefetchScalarGridSpec(
            num_scalar_prefetch=0,
            grid=grid,
            in_specs=[
                pl.BlockSpec((tr, H), lambda i: (i, 0)),
                pl.BlockSpec((1, H), lambda i: (0, 0)),
                pl.BlockSpec((1, H), lambda i: (0, 0)),
            ],
            out_specs=pl.BlockSpec((tr, H), lambda i: (i, 0)),
        ),
        compiler_params=pltpu.CompilerParams(
            dimension_semantics=("parallel",),
            vmem_limit_bytes=32 << 20,
        ),
        cost_estimate=cost,
    )(x2, w2, b2)

    return out.reshape(orig_shape)


def reference_layer_norm(x, weight, bias, eps=1e-5):
    xf = x.astype(jnp.float32)
    mean = jnp.mean(xf, axis=-1, keepdims=True)
    var = jnp.mean((xf - mean) ** 2, axis=-1, keepdims=True)
    y = (xf - mean) * jax.lax.rsqrt(var + eps)
    return (y * weight + bias).astype(x.dtype)


if __name__ == "__main__":
    key = jax.random.PRNGKey(0)
    k1, k2, k3, k4 = jax.random.split(key, 4)

    # Case 1: module defaults (weight=ones, bias=zeros after reset_parameters).
    seq, batch, hidden = 8, 2, 256
    x = jax.random.normal(k1, (seq, batch, hidden), dtype=jnp.float32)
    weight = jnp.ones((hidden,), dtype=jnp.float32)
    bias = jnp.zeros((hidden,), dtype=jnp.float32)

    out = mixed_fused_layer_norm(x, weight, bias, eps=1e-5)
    out = jax.block_until_ready(out)
    ref = reference_layer_norm(x, weight, bias, eps=1e-5)
    assert out.shape == x.shape
    assert jnp.allclose(out, ref, atol=1e-5, rtol=1e-5)

    # Case 2: ragged row count (exercises the masked partial edge block) and
    # non-trivial affine params.
    x2 = jax.random.normal(k2, (3, 5, hidden), dtype=jnp.float32)
    w2 = jax.random.normal(k3, (hidden,), dtype=jnp.float32)
    b2 = jax.random.normal(k4, (hidden,), dtype=jnp.float32)
    out2 = jax.block_until_ready(mixed_fused_layer_norm(x2, w2, b2, eps=1e-5))
    ref2 = reference_layer_norm(x2, w2, b2, eps=1e-5)
    assert out2.shape == x2.shape
    assert jnp.allclose(out2, ref2, atol=1e-5, rtol=1e-5)

    print("KERNEL_OK")
</pallas_src>

<mosaic_0001>
module attributes {stable_mosaic.version = 11 : i64} {
  func.func @_layernorm_kernel(%arg0: i32, %arg1: memref<8x256xf32, #tpu.memory_space<vmem>>, %arg2: memref<1x256xf32, #tpu.memory_space<vmem>>, %arg3: memref<1x256xf32, #tpu.memory_space<vmem>>, %arg4: memref<8x256xf32, #tpu.memory_space<vmem>>) attributes {dimension_semantics = [#tpu.dimension_semantics<parallel>], iteration_bounds = array<i64: 2>, scalar_prefetch = 0 : i64, scratch_operands = 0 : i64, tpu.core_type = #tpu.core_type<tc>, window_params = [{transform_indices = @transform_0, window_bounds = array<i64: 8, 256>}, {pipeline_mode = #tpu.pipeline_mode<synchronous>, transform_indices = @transform_1, window_bounds = array<i64: 1, 256>}, {pipeline_mode = #tpu.pipeline_mode<synchronous>, transform_indices = @transform_2, window_bounds = array<i64: 1, 256>}, {transform_indices = @transform_3, window_bounds = array<i64: 8, 256>}]} {
    %c0 = arith.constant 0 : index
    %c0_0 = arith.constant 0 : index
    %0 = vector.load %arg1[%c0, %c0_0] : memref<8x256xf32, #tpu.memory_space<vmem>>, vector<8x256xf32>
    %cst = arith.constant dense<0.000000e+00> : vector<8xf32>
    %1 = vector.multi_reduction <add>, %0, %cst [1] : vector<8x256xf32> to vector<8xf32>
    %2 = vector.shape_cast %1 : vector<8xf32> to vector<8x1xf32>
    %cst_1 = arith.constant 2.560000e+02 : f32
    %3 = vector.broadcast %cst_1 : f32 to vector<8x1xf32>
    %4 = arith.divf %2, %3 : vector<8x1xf32>
    %5 = vector.broadcast %4 : vector<8x1xf32> to vector<8x256xf32>
    %6 = arith.subf %0, %5 : vector<8x256xf32>
    %7 = arith.mulf %6, %6 : vector<8x256xf32>
    %cst_2 = arith.constant dense<0.000000e+00> : vector<8xf32>
    %8 = vector.multi_reduction <add>, %7, %cst_2 [1] : vector<8x256xf32> to vector<8xf32>
    %9 = vector.shape_cast %8 : vector<8xf32> to vector<8x1xf32>
    %cst_3 = arith.constant 2.560000e+02 : f32
    %10 = vector.broadcast %cst_3 : f32 to vector<8x1xf32>
    %11 = arith.divf %9, %10 : vector<8x1xf32>
    %cst_4 = arith.constant 9.99999974E-6 : f32
    %12 = vector.broadcast %cst_4 : f32 to vector<8x1xf32>
    %13 = arith.addf %11, %12 : vector<8x1xf32>
    %14 = math.rsqrt %13 : vector<8x1xf32>
    %15 = vector.broadcast %14 : vector<8x1xf32> to vector<8x256xf32>
    %16 = arith.mulf %6, %15 : vector<8x256xf32>
    %c0_5 = arith.constant 0 : index
    %c0_6 = arith.constant 0 : index
    %17 = vector.load %arg2[%c0_5, %c0_6] : memref<1x256xf32, #tpu.memory_space<vmem>>, vector<1x256xf32>
    %18 = vector.broadcast %17 : vector<1x256xf32> to vector<8x256xf32>
    %19 = arith.mulf %16, %18 : vector<8x256xf32>
    %c0_7 = arith.constant 0 : index
    %c0_8 = arith.constant 0 : index
    %20 = vector.load %arg3[%c0_7, %c0_8] : memref<1x256xf32, #tpu.memory_space<vmem>>, vector<1x256xf32>
    %21 = vector.broadcast %20 : vector<1x256xf32> to vector<8x256xf32>
    %22 = arith.addf %19, %21 : vector<8x256xf32>
    %c0_9 = arith.constant 0 : index
    %c0_10 = arith.constant 0 : index
    %23 = vector.load %arg4[%c0_9, %c0_10] : memref<8x256xf32, #tpu.memory_space<vmem>>, vector<8x256xf32>
    tpu.vector_store %arg4[%c0_9, %c0_10], %22 {strides = array<i32>} : memref<8x256xf32, #tpu.memory_space<vmem>>, vector<8x256xf32>,
    return
  }
  func.func @transform_0(%arg0: i32) -> (i32, i32) {
    %c0_i32 = arith.constant 0 : i32
    %c0_i32_0 = arith.constant 0 : i32
    return %arg0, %c0_i32 : i32, i32
  }
  func.func @transform_1(%arg0: i32) -> (i32, i32) {
    %c0_i32 = arith.constant 0 : i32
    %c0_i32_0 = arith.constant 0 : i32
    %c0_i32_1 = arith.constant 0 : i32
    return %c0_i32, %c0_i32_0 : i32, i32
  }
  func.func @transform_2(%arg0: i32) -> (i32, i32) {
    %c0_i32 = arith.constant 0 : i32
    %c0_i32_0 = arith.constant 0 : i32
    %c0_i32_1 = arith.constant 0 : i32
    return %c0_i32, %c0_i32_0 : i32, i32
  }
  func.func @transform_3(%arg0: i32) -> (i32, i32) {
    %c0_i32 = arith.constant 0 : i32
    %c0_i32_0 = arith.constant 0 : i32
    return %arg0, %c0_i32 : i32, i32
  }
}

</mosaic_0001>

<llo_original>
// kernel: tpu_custom_call.1
$region0: #{tpu_custom_call.1}
  #allocation0 [shape = 'u32[]', space=smem, size = 0x4, offset = 0x4, fixed_abs, tag = 'smem constant byte address 0x4 - core index']
  #allocation1 [shape = 'u32[144,128]{1,0:T(1,128)}', space=vmem, size = 0x12000, scoped, tag = 'internal scratch']
  %s0 = inlined_call_operand.hbm [shape: f32[16,256], index: 0, kind: input, shape index: {}]
  %s1 = inlined_call_operand.hbm [shape: f32[1,256], index: 1, kind: input, shape index: {}]
  %s2 = inlined_call_operand.vmem [shape: f32[1,256], index: 2, kind: input, shape index: {}]
  %s3 = inlined_call_operand.hbm [shape: f32[16,256], index: 3, kind: output, shape index: {}]
  %s4 = sld [smem:[#allocation0]]
  $region53: #{tpu_custom_call.1} parent=0
    _
  %s6 = ssub.s32 1, %s4
  %s7 = scalar_select 0, %s6, %s4
  $region1: #{tpu_custom_call.1} parent=0
    #allocation2 [shape = 'u8[16384]{0}', space=vmem, size = 0x4000, scoped, tag = 'input window, operand 0']
    #allocation3 [shape = 's32[2]{0}', space=sflag, size = 0x8, scoped, tag = 'scoped memory for tpu_custom_call.1']
    #allocation4 [shape = 's32[2]{0}', space=sflag, size = 0x8, scoped, tag = 'scoped memory for tpu_custom_call.1']
    #allocation5 [shape = 'u8[1024]{0}', space=vmem, size = 0x400, scoped, tag = 'input window, operand 1, single buffered']
    #allocation6 [shape = 's32[1]{0}', space=sflag, size = 0x4, scoped, tag = 'scoped memory for tpu_custom_call.1']
    #allocation7 [shape = 'u8[16384]{0}', space=vmem, size = 0x4000, scoped, tag = 'output window, operand 0']
    %8 = vsyncpa [#allocation3], 0
    %s9 = scalar_lea.sflag [#allocation3], 1
    %10 = vsyncpa %s9, 0
    %11 = vsyncpa [#allocation6], 0
    %12 = vsyncpa [#allocation4], 0
    %s13 = scalar_lea.sflag [#allocation4], 1
    %14 = vsyncpa %s13, 0
    loop: start=0, step=1, limit=4
    $region2: #{tpu_custom_call.1} parent=1 // loop_pre_header
      _
    $region3: #{tpu_custom_call.1} parent=1 // loop_header
      %s16 = sphi 0, %s20
      %p17 = scmp.ge.s32.totalorder %s16, 4
      %s26 = sphi 0, %s28
      %s29 = sphi 0, %s26
      %s30 = sphi 0, %s29
      %s46 = sphi 0, %s30
      %s50 = sphi 0, %s50
      %s52 = sphi 0, %s50
      %s53 = sphi 0, %s52
      %s67 = sphi 0, %s53
      %s71 = sphi 0, %s71
      %s73 = sphi 0, %s71
      %s74 = sphi 0, %s73
      %s88 = sphi 0, %s74
      %s94 = sphi 0, %s96
      %s97 = sphi 0, %s94
      %s98 = sphi 0, %s97
      %s114 = sphi 0, %s98
    $region4: #{tpu_custom_call.1} parent=1 // loop_header_branch
      %19 = sbr.rel (%p17) target = $region8
    $region5: #{tpu_custom_call.1} parent=1 // loop_body
      %s21 = ssub.s32 %s16, 1
      %s22 = ssub.s32 %s16, 2
      %s23 = sadd.s32 %s16, 1
      %s24 = ssub.s32 %s16, %s23
      %p25 = scmp.eq.s32.totalorder %s24, 0
      %s27 = sadd.s32 %s26, 1
      %s28 = scalar_select %p25, %s26, %s27
      %p31 = pneg %p25
      %p32 = scmp.eq.s32.totalorder %s16, 1
      %p33 = por %p31, %p32
      %p34 = scmp.ne.s32.totalorder %s26, %s29
      %p35 = scmp.eq.s32.totalorder %s16, 0
      %p36 = por %p34, %p35
      %p37 = scmp.ne.s32.totalorder %s26, %s29
      %p38 = scmp.eq.s32.totalorder %s21, 1
      %p39 = por %p37, %p38
      %p40 = scmp.ne.s32.totalorder %s29, %s30
      %p41 = scmp.eq.s32.totalorder %s21, 0
      %p42 = por %p40, %p41
      %p43 = scmp.ne.s32.totalorder %s29, %s30
      %p44 = scmp.eq.s32.totalorder %s22, 1
      %p45 = por %p43, %p44
      %p47 = scmp.ne.s32.totalorder %s30, %s46
      %p48 = scmp.eq.s32.totalorder %s22, 0
      %p49 = por %p47, %p48
      %s51 = sadd.s32 %s50, 1
      %p54 = scmp.eq.s32.totalorder %s16, 1
      %p55 = scmp.ne.s32.totalorder %s50, %s52
      %p56 = scmp.eq.s32.totalorder %s16, 0
      %p57 = por %p55, %p56
      %p58 = scmp.ne.s32.totalorder %s50, %s52
      %p59 = scmp.eq.s32.totalorder %s21, 1
      %p60 = por %p58, %p59
      %p61 = scmp.ne.s32.totalorder %s52, %s53
      %p62 = scmp.eq.s32.totalorder %s21, 0
      %p63 = por %p61, %p62
      %p64 = scmp.ne.s32.totalorder %s52, %s53
      %p65 = scmp.eq.s32.totalorder %s22, 1
      %p66 = por %p64, %p65
      %p68 = scmp.ne.s32.totalorder %s53, %s67
      %p69 = scmp.eq.s32.totalorder %s22, 0
      %p70 = por %p68, %p69
      %s72 = sadd.s32 %s71, 1
      %p75 = scmp.eq.s32.totalorder %s16, 1
      %p76 = scmp.ne.s32.totalorder %s71, %s73
      %p77 = scmp.eq.s32.totalorder %s16, 0
      %p78 = por %p76, %p77
      %p79 = scmp.ne.s32.totalorder %s71, %s73
      %p80 = scmp.eq.s32.totalorder %s21, 1
      %p81 = por %p79, %p80
      %p82 = scmp.ne.s32.totalorder %s73, %s74
      %p83 = scmp.eq.s32.totalorder %s21, 0
      %p84 = por %p82, %p83
      %p85 = scmp.ne.s32.totalorder %s73, %s74
      %p86 = scmp.eq.s32.totalorder %s22, 1
      %p87 = por %p85, %p86
      %p89 = scmp.ne.s32.totalorder %s74, %s88
      %p90 = scmp.eq.s32.totalorder %s22, 0
      %p91 = por %p89, %p90
      %s92 = ssub.s32 %s16, %s23
      %p93 = scmp.eq.s32.totalorder %s92, 0
      %s95 = sadd.s32 %s94, 1
      %s96 = scalar_select %p93, %s94, %s95
      %p99 = pneg %p93
      %p100 = scmp.eq.s32.totalorder %s16, 1
      %p101 = por %p99, %p100
      %p102 = scmp.ne.s32.totalorder %s94, %s97
      %p103 = scmp.eq.s32.totalorder %s16, 0
      %p104 = por %p102, %p103
      %p105 = scmp.ne.s32.totalorder %s94, %s97
      %p106 = scmp.eq.s32.totalorder %s21, 1
      %p107 = por %p105, %p106
      %p108 = scmp.ne.s32.totalorder %s97, %s98
      %p109 = scmp.eq.s32.totalorder %s21, 0
      %p110 = por %p108, %p109
      %p111 = scmp.ne.s32.totalorder %s97, %s98
      %p112 = scmp.eq.s32.totalorder %s22, 1
      %p113 = por %p111, %p112
      %p115 = scmp.ne.s32.totalorder %s98, %s114
      %p116 = scmp.eq.s32.totalorder %s22, 0
      %p117 = por %p115, %p116
      %p118 = scmp.le.s32.totalorder 1, %s16
      %p119 = scmp.lt.s32.totalorder %s16, 3
      %p120 = pnand %p118, %p119
      %p121 = pneg %p120
      // Predicated region
      $region9: #{tpu_custom_call.1} parent=5 // pred_check
        _
      $region10: #{tpu_custom_call.1} parent=5 // pred_check_branch
        %123 = sbr.rel (%p120) target = $region12
      $region11: #{tpu_custom_call.1} parent=5 // pred_region
        %s124 = ssub.s32 %s16, 1
        // Predicated region
        $region13: #{tpu_custom_call.1} parent=11 // pred_check
          %p125 = pneg %p63
        $region14: #{tpu_custom_call.1} parent=11 // pred_check_branch
          %127 = sbr.rel (%p125) target = $region16
        $region15: #{tpu_custom_call.1} parent=11 // pred_region
          %s129 = ssub.s32 32, 32
          %130 = vsyncadd [#allocation6], %s129
          %s132 = sshll.u32 [#allocation5], 4
          %s133 = int_to_ptr.vmem [resolvable:$true] %s132
          %135 = dma.hbm_to_vmem [thread:$0]  %s1, 32, %s133, [#allocation6]
        $region16: #{tpu_custom_call.1} parent=11 // pred_fallthru
          _
        // Predicated region
        $region17: #{tpu_custom_call.1} parent=11 // pred_check
          %p136 = pneg %p84
        $region18: #{tpu_custom_call.1} parent=11 // pred_check_branch
          %138 = sbr.rel (%p136) target = $region20
        $region19: #{tpu_custom_call.1} parent=11 // pred_region
          _
        $region20: #{tpu_custom_call.1} parent=11 // pred_fallthru
          _
      $region12: #{tpu_custom_call.1} parent=5 // pred_fallthru
        _
      %p139 = scmp.lt.s32.totalorder %s16, 2
      // Predicated region
      $region21: #{tpu_custom_call.1} parent=5 // pred_check
        %p140 = pneg %p139
      $region22: #{tpu_custom_call.1} parent=5 // pred_check_branch
        %142 = sbr.rel (%p140) target = $region24
      $region23: #{tpu_custom_call.1} parent=5 // pred_region
        // Predicated region
        $region25: #{tpu_custom_call.1} parent=23 // pred_check
          %p143 = pneg %p36
        $region26: #{tpu_custom_call.1} parent=23 // pred_check_branch
          %145 = sbr.rel (%p143) target = $region28
        $region27: #{tpu_custom_call.1} parent=23 // pred_region
          %s146 = sand.u32 %s26, 1
          %s147 = scalar_lea.sflag [#allocation3], %s146
          %s148 = sand.u32 %s26, 1
          %s149 = smul.addr %s148, 16
          %s150 = scalar_lea.vmem [#allocation2], %s149
          %s152 = ssub.s32 256, 256
          %153 = vsyncadd %s147, %s152
          %s154 = smul.addr %s16, 2
          %s155 = smul.addr %s154, 128
          %s156 = scalar_lea.hbm %s0, %s155
          %s158 = sshll.u32 %s150, 4
          %s159 = int_to_ptr.vmem [resolvable:$true] %s158
          %161 = dma.hbm_to_vmem [thread:$0]  %s156, 256, %s159, %s147
        $region28: #{tpu_custom_call.1} parent=23 // pred_fallthru
          _
      $region24: #{tpu_custom_call.1} parent=5 // pred_fallthru
        _
      %p162 = scmp.le.s32.totalorder 1, %s16
      %p163 = scmp.lt.s32.totalorder %s16, 3
      %p164 = pnand %p162, %p163
      %p165 = pneg %p164
      // Predicated region
      $region29: #{tpu_custom_call.1} parent=5 // pred_check
        _
      $region30: #{tpu_custom_call.1} parent=5 // pred_check_branch
        %167 = sbr.rel (%p164) target = $region32
      $region31: #{tpu_custom_call.1} parent=5 // pred_region
        %s168 = ssub.s32 %s16, 1
        %s169 = sand.u32 %s29, 1
        %s170 = scalar_lea.sflag [#allocation3], %s169
        %s171 = sand.u32 %s29, 1
        %s172 = smul.addr %s171, 16
        %s173 = scalar_lea.vmem [#allocation2], %s172
        // Predicated region
        $region33: #{tpu_custom_call.1} parent=31 // pred_check
          %p174 = pneg %p42
        $region34: #{tpu_custom_call.1} parent=31 // pred_check_branch
          %176 = sbr.rel (%p174) target = $region36
        $region35: #{tpu_custom_call.1} parent=31 // pred_region
          %177 = dma.done %s170, 256
        $region36: #{tpu_custom_call.1} parent=31 // pred_fallthru
          _
        // Predicated region
        $region37: #{tpu_custom_call.1} parent=31 // pred_check
          %p178 = pneg %p63
        $region38: #{tpu_custom_call.1} parent=31 // pred_check_branch
          %180 = sbr.rel (%p178) target = $region40
        $region39: #{tpu_custom_call.1} parent=31 // pred_region
          %181 = dma.done [#allocation6], 32
        $region40: #{tpu_custom_call.1} parent=31 // pred_fallthru
          _
        %s182 = sand.u32 %s29, 1
        %s183 = scalar_lea.sflag [#allocation3], %s182
        %s184 = sand.u32 %s29, 1
        %s185 = smul.addr %s184, 16
        %s186 = scalar_lea.vmem [#allocation2], %s185
        %p187 = pneg %p42
        %p188 = pneg %p39
        %p189 = pneg %p63
        %p190 = pneg %p60
        %p191 = pneg %p84
        %p192 = pneg %p81
        %p193 = pneg %p110
        %p194 = pneg %p107
        %s195 = sand.u32 %s97, 1
        %s196 = scalar_lea.sflag [#allocation4], %s195
        %s197 = sand.u32 %s97, 1
        %s198 = smul.addr %s197, 16
        %s199 = scalar_lea.vmem [#allocation7], %s198
        %v200 = vld [vmem:[%s173] sm:$0xff]
        %v201 = vld [vmem:[%s173 + $0x8] sm:$0xff]
        %v202 = vadd.f32 %v200, %v201
        %203 = vadd.xlane.f32.xlu0 %v202
        %v204 = vpop.xlane.xlu0 %203
        %v205 = vrcp.pop 256.0
        %v206 = vmul.f32 %v204, %v205
        %v207 = vsub.f32 %v200, %v206
        %v208 = vsub.f32 %v201, %v206
        %v209 = vmul.f32 %v207, %v207
        %v210 = vmul.f32 %v208, %v208
        %v211 = vadd.f32 %v209, %v210
        %212 = vadd.xlane.f32.xlu0 %v211
        %v213 = vpop.xlane.xlu0 %212
        %v214 = vmul.f32 %v213, %v205
        %v215 = vadd.f32 %v214, 1e-05
        %v216 = vrsqrt.pop %v215
        %v217 = vmul.f32 %v207, %v216
        %v218 = vmul.f32 %v208, %v216
        %v219 = vld [vmem:[#allocation5] sm:$0x3]
        %v221 = vlaneseq
        %v222 = vshrl.u32 %v221, 7
        %v223 = vsub.s32 0, %v222
        %v224 = vrot.slane %v219, %v223
        %v225 = vlaneseq
        %v226 = vshrl.u32 %v225, 7
        %v227 = vsub.s32 1, %v226
        %v228 = vrot.slane %v219, %v227
        %v231 = vmul.f32 %v217, %v224
        %v232 = vmul.f32 %v218, %v228
        %v233 = vld [vmem:[%s2] sm:$0x3]
        %v235 = vlaneseq
        %v236 = vshrl.u32 %v235, 7
        %v237 = vsub.s32 0, %v236
        %v238 = vrot.slane %v233, %v237
        %v239 = vlaneseq
        %v240 = vshrl.u32 %v239, 7
        %v241 = vsub.s32 1, %v240
        %v242 = vrot.slane %v233, %v241
        %v245 = vadd.f32 %v231, %v238
        %v246 = vadd.f32 %v232, %v242
        %247 = vst [vmem:[%s199] sm:$0xff] %v245
        %248 = vst [vmem:[%s199 + $0x8] sm:$0xff] %v246
        %s249 = sand.u32 %s97, 1
        %s250 = scalar_lea.sflag [#allocation4], %s249
        %s251 = sand.u32 %s97, 1
        %s252 = smul.addr %s251, 16
        %s253 = scalar_lea.vmem [#allocation7], %s252
        // Predicated region
        $region41: #{tpu_custom_call.1} parent=31 // pred_check
          %p254 = pneg %p107
        $region42: #{tpu_custom_call.1} parent=31 // pred_check_branch
          %256 = sbr.rel (%p254) target = $region44
        $region43: #{tpu_custom_call.1} parent=31 // pred_region
          %s258 = ssub.s32 256, 256
          %259 = vsyncadd %s250, %s258
          %s260 = smul.addr %s21, 2
          %s261 = smul.addr %s260, 128
          %s262 = scalar_lea.hbm %s3, %s261
          %s264 = sshll.u32 %s253, 4
          %s265 = int_to_ptr.vmem [resolvable:$true] %s264
          %267 = dma.vmem_to_hbm [thread:$0]  %s265, 256, %s262, %s250
        $region44: #{tpu_custom_call.1} parent=31 // pred_fallthru
          _
      $region32: #{tpu_custom_call.1} parent=5 // pred_fallthru
        _
      %p268 = scmp.le.s32.totalorder 2, %s16
      // Predicated region
      $region45: #{tpu_custom_call.1} parent=5 // pred_check
        %p269 = pneg %p268
      $region46: #{tpu_custom_call.1} parent=5 // pred_check_branch
        %271 = sbr.rel (%p269) target = $region48
      $region47: #{tpu_custom_call.1} parent=5 // pred_region
        %s272 = ssub.s32 %s16, 2
        // Predicated region
        $region49: #{tpu_custom_call.1} parent=47 // pred_check
          %p273 = pneg %p113
        $region50: #{tpu_custom_call.1} parent=47 // pred_check_branch
          %275 = sbr.rel (%p273) target = $region52
        $region51: #{tpu_custom_call.1} parent=47 // pred_region
          %s276 = sand.u32 %s98, 1
          %s277 = scalar_lea.sflag [#allocation4], %s276
          %s278 = sand.u32 %s98, 1
          %s279 = smul.addr %s278, 16
          %s280 = scalar_lea.vmem [#allocation7], %s279
          %281 = dma.done %s277, 256
        $region52: #{tpu_custom_call.1} parent=47 // pred_fallthru
          _
      $region48: #{tpu_custom_call.1} parent=5 // pred_fallthru
        _
    $region6: #{tpu_custom_call.1} parent=1 // loop_footer
      %s20 = sadd.s32 1, %s16
    $region7: #{tpu_custom_call.1} parent=1 // loop_footer_branch
      %15 = sbr.rel target = $region3
    $region8: #{tpu_custom_call.1} parent=1 // loop_exit
      _
    %282 = vsyncpa [#allocation3], 1
    %s283 = scalar_lea.sflag [#allocation3], 1
    %284 = vsyncpa %s283, 1
    %285 = vsyncpa [#allocation6], 1
    %286 = vsyncpa [#allocation4], 1
    %s287 = scalar_lea.sflag [#allocation4], 1
    %288 = vsyncpa %s287, 1

</llo_original>
